<compile_context>
chip_gen: v5e
topology: v5e:2x2
jax: 0.10.0
libtpu: 0.0.40
codegen_flags: <defaults>
</compile_context>

<pallas_src>
import jax
import jax.numpy as jnp
from jax import lax
from jax.experimental import pallas as pl
from jax.experimental.pallas import tpu as pltpu


def _cdiv(a, b):
    return (a + b - 1) // b


def _round_up(a, m):
    return _cdiv(a, m) * m


# ----------------------------------------------------------------------------
# Pallas kernel: hoisted input projection (time-major, staged in VMEM) +
# unrolled LSTM recurrence + fc_concat/PReLU + split-fc + fc2/LeakyReLU
# ----------------------------------------------------------------------------
def alibaba_lstm_kernel(
    x_ref,      # (T, BB, I)  bf16, time-major
    add_ref,    # (BB, C)     bf16 "additional" features
    wih_ref,    # (I, 4H)     bf16 LSTM input->hidden (transposed, gates i,f,g,o)
    whh_ref,    # (H, 4H)     bf16 LSTM hidden->hidden (transposed)
    b_ref,      # (1, 4H)     f32  b_ih + b_hh
    wc_ref,     # (C, H2)     bf16 fc_concat weight (transposed)
    bc_ref,     # (1, H2)     f32  fc_concat bias
    wfch_ref,   # (H, H3)     bf16 fc weight, h-part (transposed)
    wfca_ref,   # (H2, H3)    bf16 fc weight, additional-part (transposed)
    bfc_ref,    # (1, H3)     f32  fc bias
    w2_ref,     # (H3, Opad)  bf16 fc2 weight (transposed, lane-padded)
    b2_ref,     # (1, Opad)   f32  fc2 bias (lane-padded)
    alpha_ref,  # (1, 1)      f32  PReLU slope, in SMEM
    out_ref,    # (BB, Opad)  f32
    gx_ref,     # (T, BB, 4H) f32  VMEM scratch: staged gate pre-activations
):
    T, BB, I = x_ref.shape
    H = whh_ref.shape[0]
    bf16 = jnp.bfloat16

    # ---- hoisted input projection: single (T*BB, I) @ (I, 4H) matmul ----
    x_flat = x_ref[...].reshape(T * BB, I)
    gx = jnp.dot(x_flat, wih_ref[...],
                 preferred_element_type=jnp.float32) + b_ref[...]   # (T*BB, 4H)
    gx_ref[...] = gx.reshape(T, BB, 4 * H)       # explicit VMEM staging

    whh = whh_ref[...]                           # bf16, kept resident
    h = jnp.zeros((BB, H), jnp.float32)
    c = jnp.zeros((BB, H), jnp.float32)

    # ---- fully unrolled recurrence (T is static and small) ----
    for t in range(T):
        if t == 0:
            gates = gx_ref[0]                    # h0 == 0: skip the matmul (exact)
        else:
            gates = gx_ref[t] + jnp.dot(
                h.astype(bf16), whh, preferred_element_type=jnp.float32)
        # sigmoid via tanh: sigma(x) = 0.5*(1 + tanh(0.5*x))  -> 1 EUP pass
        sig = 0.5 * (jnp.tanh(0.5 * gates) + 1.0)   # full-vreg (4H == 128 lanes)
        tnh = jnp.tanh(gates)                       # full-vreg, for the g gate
        i_g = sig[:, 0:H]
        f_g = sig[:, H:2 * H]
        g_g = tnh[:, 2 * H:3 * H]
        o_g = sig[:, 3 * H:4 * H]
        c = f_g * c + i_g * g_g
        h = o_g * jnp.tanh(c)

    # ---- additional_transformed = PReLU(fc_concat(additional)) ----
    z = jnp.dot(add_ref[...], wc_ref[...],
                preferred_element_type=jnp.float32) + bc_ref[...]
    alpha = alpha_ref[0, 0]
    add_t = jnp.where(z >= 0.0, z, alpha * z)

    # ---- fc on the "concat" without concatenating (split weights) ----
    hidden = (jnp.dot(h.astype(bf16), wfch_ref[...],
                      preferred_element_type=jnp.float32)
              + jnp.dot(add_t.astype(bf16), wfca_ref[...],
                        preferred_element_type=jnp.float32)
              + bfc_ref[...])

    # ---- output = LeakyReLU(fc2(hidden)); lane-dense (O padded to 128) ----
    y = jnp.dot(hidden.astype(bf16), w2_ref[...],
                preferred_element_type=jnp.float32) + b2_ref[...]
    out_ref[...] = jnp.where(y >= 0.0, y, 0.01 * y)


# ----------------------------------------------------------------------------
# Wrapper
# ----------------------------------------------------------------------------
def alibaba_lstm_forward(x, additional, params, *, batch_tile=None):
    """x: (B, T, input_size), additional: (B, concat_size) -> (B, output_size)."""
    B, T, I = x.shape
    C = additional.shape[1]
    H = params["w_hh"].shape[1]
    H2 = params["w_concat"].shape[0]
    H3 = params["w_fc"].shape[0]
    O = params["w_fc2"].shape[0]

    # ---- tile selection: large 16-multiple tiles, ~256 rows each, so big
    # batches give >=2 parallel tiles (v7x TC sharding + DMA double-buffer)
    if batch_tile is None:
        b16 = _round_up(B, 16)
        n_tiles = _cdiv(b16, 256)
        batch_tile = _round_up(_cdiv(b16, n_tiles), 16)
    assert batch_tile % 16 == 0, "batch tile must be a multiple of 16 (bf16 sublanes)"
    BB = batch_tile
    B_pad = _round_up(B, BB)                               # sublane/tile dense
    O_pad = _round_up(O, 128)                              # lane-dense stores

    bf16, f32 = jnp.bfloat16, jnp.float32

    # Inputs: bf16 matmul operands, time-major, batch padded to a tile multiple.
    x_tm = jnp.transpose(x.astype(bf16), (1, 0, 2))        # (T, B, I) - tiny transpose
    add_bf = additional.astype(bf16)
    if B_pad != B:
        x_tm = jnp.pad(x_tm, ((0, 0), (0, B_pad - B), (0, 0)))
        add_bf = jnp.pad(add_bf, ((0, B_pad - B), (0, 0)))

    # Weights pre-transposed to (in, out); LSTM biases folded; fc weight split.
    wih_t = params["w_ih"].T.astype(bf16)                       # (I, 4H)
    whh_t = params["w_hh"].T.astype(bf16)                       # (H, 4H)
    b_sum = (params["b_ih"] + params["b_hh"])[None, :].astype(f32)   # (1, 4H)
    wc_t = params["w_concat"].T.astype(bf16)                    # (C, H2)
    bc = params["b_concat"][None, :].astype(f32)                # (1, H2)
    alpha = params["prelu_alpha"].reshape(1, 1).astype(f32)     # (1, 1) -> SMEM
    wfc_t = params["w_fc"].T                                    # (H+H2, H3)
    wfc_h = wfc_t[:H, :].astype(bf16)                           # (H, H3)
    wfc_a = wfc_t[H:, :].astype(bf16)                           # (H2, H3)
    bfc = params["b_fc"][None, :].astype(f32)                   # (1, H3)
    w2_p = jnp.pad(params["w_fc2"].T.astype(bf16),
                   ((0, 0), (0, O_pad - O)))                    # (H3, Opad)
    b2_p = jnp.pad(params["b_fc2"][None, :].astype(f32),
                   ((0, 0), (0, O_pad - O)))                    # (1, Opad)

    grid = (B_pad // BB,)
    const2 = lambda i: (0, 0)   # weights stay resident across the batch grid

    in_specs = [
        pl.BlockSpec((T, BB, I), lambda i: (0, i, 0)),   # x (time-major)
        pl.BlockSpec((BB, C), lambda i: (i, 0)),         # additional
        pl.BlockSpec((I, 4 * H), const2),                # w_ih^T
        pl.BlockSpec((H, 4 * H), const2),                # w_hh^T
        pl.BlockSpec((1, 4 * H), const2),                # b_ih + b_hh
        pl.BlockSpec((C, H2), const2),                   # w_concat^T
        pl.BlockSpec((1, H2), const2),                   # b_concat
        pl.BlockSpec((H, H3), const2),                   # w_fc^T (h part)
        pl.BlockSpec((H2, H3), const2),                  # w_fc^T (additional part)
        pl.BlockSpec((1, H3), const2),                   # b_fc
        pl.BlockSpec((H3, O_pad), const2),               # w_fc2^T (lane padded)
        pl.BlockSpec((1, O_pad), const2),                # b_fc2 (lane padded)
        pl.BlockSpec((1, 1), const2,
                     memory_space=pltpu.MemorySpace.SMEM),  # PReLU alpha scalar
    ]
    out_specs = pl.BlockSpec((BB, O_pad), lambda i: (i, 0))

    # ---- VMEM budget: double-buffered I/O tiles + resident weights + gx scratch.
    io_bytes = 2 * (T * BB * I * 2 + BB * C * 2 + BB * O_pad * 4)
    w_bytes = 2 * ((I * 4 * H + H * 4 * H + C * H2 + H * H3 + H2 * H3 + H3 * O_pad) * 2
                   + (4 * H + H2 + H3 + O_pad) * 4)
    scratch_bytes = T * BB * 4 * H * 4
    vmem_limit = int(min(64 << 20, max(32 << 20, 2 * (io_bytes + w_bytes + scratch_bytes))))

    out_padded = pl.pallas_call(
        alibaba_lstm_kernel,
        out_shape=jax.ShapeDtypeStruct((B_pad, O_pad), jnp.float32),
        grid=grid,
        in_specs=in_specs,
        out_specs=out_specs,
        scratch_shapes=[pltpu.VMEM((T, BB, 4 * H), jnp.float32)],
        compiler_params=pltpu.CompilerParams(
            dimension_semantics=("parallel",),     # batch tiles shard across TCs on v7x
            vmem_limit_bytes=vmem_limit),
    )(x_tm, add_bf, wih_t, whh_t, b_sum, wc_t, bc,
      wfc_h, wfc_a, bfc, w2_p, b2_p, alpha)

    return out_padded[:B, :O]


# ----------------------------------------------------------------------------
# Deterministic parameter init (mirrors the module's initialize_weights calls)
# ----------------------------------------------------------------------------
def make_params(key, input_size, hidden_size, concat_size, hidden_size_2,
                hidden_size_3, output_size):
    ks = jax.random.split(key, 6)
    H = hidden_size

    def xavier_uniform(k, shape):
        fan_out, fan_in = shape
        limit = (6.0 / (fan_in + fan_out)) ** 0.5
        return jax.random.uniform(k, shape, jnp.float32, -limit, limit)

    def he_normal(k, shape):
        fan_in = shape[1]
        return jax.random.normal(k, shape, jnp.float32) * (2.0 / fan_in) ** 0.5

    def small_normal(k, shape):
        return jax.random.normal(k, shape, jnp.float32) * 0.01

    return {
        # LSTM (Xavier weights, biases = 1), PyTorch gate order i, f, g, o
        "w_ih": xavier_uniform(ks[0], (4 * H, input_size)),
        "w_hh": xavier_uniform(ks[1], (4 * H, H)),
        "b_ih": jnp.ones((4 * H,), jnp.float32),
        "b_hh": jnp.ones((4 * H,), jnp.float32),
        # fc_concat (He normal weights, bias 0)
        "w_concat": he_normal(ks[2], (hidden_size_2, concat_size)),
        "b_concat": jnp.zeros((hidden_size_2,), jnp.float32),
        # PReLU (default init 0.25, single parameter)
        "prelu_alpha": jnp.array([0.25], jnp.float32),
        # fc (Normal std 0.01, bias 0)
        "w_fc": small_normal(ks[3], (hidden_size_3, H + hidden_size_2)),
        "b_fc": jnp.zeros((hidden_size_3,), jnp.float32),
        # fc2 (Normal std 0.01, bias 0)
        "w_fc2": small_normal(ks[4], (output_size, hidden_size_3)),
        "b_fc2": jnp.zeros((output_size,), jnp.float32),
    }


# ----------------------------------------------------------------------------
# References
# ----------------------------------------------------------------------------
def ref_forward_f32(x, additional, params):
    """Module-faithful full-f32 reference."""
    B, T, _ = x.shape
    H = params["w_hh"].shape[1]
    b = params["b_ih"] + params["b_hh"]

    def step(carry, x_t):
        h, c = carry
        gates = x_t @ params["w_ih"].T + h @ params["w_hh"].T + b
        i_g = jax.nn.sigmoid(gates[:, 0:H])
        f_g = jax.nn.sigmoid(gates[:, H:2 * H])
        g_g = jnp.tanh(gates[:, 2 * H:3 * H])
        o_g = jax.nn.sigmoid(gates[:, 3 * H:4 * H])
        c_new = f_g * c + i_g * g_g
        h_new = o_g * jnp.tanh(c_new)
        return (h_new, c_new), None

    h0 = jnp.zeros((B, H), jnp.float32)
    c0 = jnp.zeros((B, H), jnp.float32)
    (h_final, _), _ = lax.scan(step, (h0, c0), jnp.transpose(x, (1, 0, 2)))

    z = additional @ params["w_concat"].T + params["b_concat"]
    add_t = jnp.where(z >= 0, z, params["prelu_alpha"][0] * z)
    concat = jnp.concatenate([h_final, add_t], axis=1)
    hidden = concat @ params["w_fc"].T + params["b_fc"]
    y = hidden @ params["w_fc2"].T + params["b_fc2"]
    return jnp.where(y >= 0, y, 0.01 * y)


def ref_forward_bf16(x, additional, params):
    """Precision-matched reference: same bf16-input / f32-accum / tanh-sigmoid
    math as the kernel."""
    bf = jnp.bfloat16
    B, T, I = x.shape
    H = params["w_hh"].shape[1]

    wih = params["w_ih"].T.astype(bf)
    whh = params["w_hh"].T.astype(bf)
    b = (params["b_ih"] + params["b_hh"]).astype(jnp.float32)

    gx = jnp.dot(x.astype(bf).reshape(B * T, I), wih,
                 preferred_element_type=jnp.float32) + b
    gx = gx.reshape(B, T, 4 * H)

    h = jnp.zeros((B, H), jnp.float32)
    c = jnp.zeros((B, H), jnp.float32)
    for t in range(T):
        if t == 0:
            gates = gx[:, 0, :]
        else:
            gates = gx[:, t, :] + jnp.dot(h.astype(bf), whh,
                                          preferred_element_type=jnp.float32)
        sig = 0.5 * (jnp.tanh(0.5 * gates) + 1.0)
        tnh = jnp.tanh(gates)
        i_g, f_g = sig[:, 0:H], sig[:, H:2 * H]
        g_g, o_g = tnh[:, 2 * H:3 * H], sig[:, 3 * H:4 * H]
        c = f_g * c + i_g * g_g
        h = o_g * jnp.tanh(c)

    z = jnp.dot(additional.astype(bf), params["w_concat"].T.astype(bf),
                preferred_element_type=jnp.float32) + params["b_concat"]
    add_t = jnp.where(z >= 0, z, params["prelu_alpha"][0] * z)

    wfc_t = params["w_fc"].T
    hidden = (jnp.dot(h.astype(bf), wfc_t[:H, :].astype(bf),
                      preferred_element_type=jnp.float32)
              + jnp.dot(add_t.astype(bf), wfc_t[H:, :].astype(bf),
                        preferred_element_type=jnp.float32)
              + params["b_fc"])
    y = jnp.dot(hidden.astype(bf), params["w_fc2"].T.astype(bf),
                preferred_element_type=jnp.float32) + params["b_fc2"]
    return jnp.where(y >= 0, y, 0.01 * y)


if __name__ == "__main__":
    # Small shapes consistent with the module's forward signature.
    B, T = 2, 8
    input_size = 4
    hidden_size = 32
    concat_size = 4
    hidden_size_2 = 16
    hidden_size_3 = 16
    output_size = 8

    key = jax.random.PRNGKey(0)
    kx, ka, kp = jax.random.split(key, 3)
    x = jax.random.normal(kx, (B, T, input_size), jnp.float32)
    additional = jax.random.normal(ka, (B, concat_size), jnp.float32)
    params = make_params(kp, input_size, hidden_size, concat_size,
                         hidden_size_2, hidden_size_3, output_size)

    out = alibaba_lstm_forward(x, additional, params)
    out = jax.block_until_ready(out)
    assert out.shape == (B, output_size)

    # Tight check against the precision-matched (bf16-matmul, tanh-sigmoid) reference.
    ref_bf = ref_forward_bf16(x, additional, params)
    assert jnp.allclose(out, ref_bf, atol=2e-4, rtol=2e-3), \
        "mismatch vs precision-matched reference"

    # Loose check against the module-faithful f32 reference (bf16 matmul noise only).
    ref32 = ref_forward_f32(x, additional, params)
    assert jnp.allclose(out, ref32, atol=2e-3, rtol=5e-2), \
        "mismatch vs f32 reference"

    # Multi-tile grid smoke test (exercises batch padding + >1 grid step).
    B2 = 40
    x2 = jax.random.normal(jax.random.PRNGKey(1), (B2, T, input_size), jnp.float32)
    a2 = jax.random.normal(jax.random.PRNGKey(2), (B2, concat_size), jnp.float32)
    out2 = jax.block_until_ready(
        alibaba_lstm_forward(x2, a2, params, batch_tile=16))
    ref2 = ref_forward_bf16(x2, a2, params)
    assert out2.shape == (B2, output_size)
    assert jnp.allclose(out2, ref2, atol=2e-4, rtol=2e-3), \
        "mismatch vs precision-matched reference (multi-tile)"

    print("KERNEL_OK")
</pallas_src>

<mosaic_0001>
module attributes {stable_mosaic.version = 11 : i64} {
  func.func @alibaba_lstm_kernel(%arg0: i32, %arg1: memref<8x16x4xbf16, #tpu.memory_space<vmem>>, %arg2: memref<16x4xbf16, #tpu.memory_space<vmem>>, %arg3: memref<4x128xbf16, #tpu.memory_space<vmem>>, %arg4: memref<32x128xbf16, #tpu.memory_space<vmem>>, %arg5: memref<1x128xf32, #tpu.memory_space<vmem>>, %arg6: memref<4x16xbf16, #tpu.memory_space<vmem>>, %arg7: memref<1x16xf32, #tpu.memory_space<vmem>>, %arg8: memref<32x16xbf16, #tpu.memory_space<vmem>>, %arg9: memref<16x16xbf16, #tpu.memory_space<vmem>>, %arg10: memref<1x16xf32, #tpu.memory_space<vmem>>, %arg11: memref<16x128xbf16, #tpu.memory_space<vmem>>, %arg12: memref<1x128xf32, #tpu.memory_space<vmem>>, %arg13: memref<1x1xf32, #tpu.memory_space<smem>>, %arg14: memref<16x128xf32, #tpu.memory_space<vmem>>, %arg15: memref<8x16x128xf32, #tpu.memory_space<vmem>>) attributes {dimension_semantics = [#tpu.dimension_semantics<parallel>], iteration_bounds = array<i64: 1>, scalar_prefetch = 0 : i64, scratch_operands = 1 : i64, tpu.core_type = #tpu.core_type<tc>, window_params = [{transform_indices = @transform_0, window_bounds = array<i64: 8, 16, 4>}, {transform_indices = @transform_1, window_bounds = array<i64: 16, 4>}, {pipeline_mode = #tpu.pipeline_mode<synchronous>, transform_indices = @transform_2, window_bounds = array<i64: 4, 128>}, {pipeline_mode = #tpu.pipeline_mode<synchronous>, transform_indices = @transform_3, window_bounds = array<i64: 32, 128>}, {pipeline_mode = #tpu.pipeline_mode<synchronous>, transform_indices = @transform_4, window_bounds = array<i64: 1, 128>}, {pipeline_mode = #tpu.pipeline_mode<synchronous>, transform_indices = @transform_5, window_bounds = array<i64: 4, 16>}, {pipeline_mode = #tpu.pipeline_mode<synchronous>, transform_indices = @transform_6, window_bounds = array<i64: 1, 16>}, {pipeline_mode = #tpu.pipeline_mode<synchronous>, transform_indices = @transform_7, window_bounds = array<i64: 32, 16>}, {pipeline_mode = #tpu.pipeline_mode<synchronous>, transform_indices = @transform_8, window_bounds = array<i64: 16, 16>}, {pipeline_mode = #tpu.pipeline_mode<synchronous>, transform_indices = @transform_9, window_bounds = array<i64: 1, 16>}, {pipeline_mode = #tpu.pipeline_mode<synchronous>, transform_indices = @transform_10, window_bounds = array<i64: 16, 128>}, {pipeline_mode = #tpu.pipeline_mode<synchronous>, transform_indices = @transform_11, window_bounds = array<i64: 1, 128>}, {transform_indices = @transform_12, window_bounds = array<i64: 1, 1>}, {transform_indices = @transform_13, window_bounds = array<i64: 16, 128>}]} {
    %c0 = arith.constant 0 : index
    %c0_0 = arith.constant 0 : index
    %c0_1 = arith.constant 0 : index
    %0 = vector.load %arg1[%c0, %c0_0, %c0_1] : memref<8x16x4xbf16, #tpu.memory_space<vmem>>, vector<8x16x4xbf16>
    %1 = vector.shape_cast %0 : vector<8x16x4xbf16> to vector<128x4xbf16>
    %c0_2 = arith.constant 0 : index
    %c0_3 = arith.constant 0 : index
    %2 = vector.load %arg3[%c0_2, %c0_3] : memref<4x128xbf16, #tpu.memory_space<vmem>>, vector<4x128xbf16>
    %cst = arith.constant dense<0.000000e+00> : vector<128x128xf32>
    %3 = tpu.matmul %1, %2, %cst {dimension_numbers = #tpu.dot_dimension_numbers<[1], [0], [0], [1], [0, 0, 1, 1], [], []>} : vector<128x4xbf16>, vector<4x128xbf16>, vector<128x128xf32> -> vector<128x128xf32>
    %c0_4 = arith.constant 0 : index
    %c0_5 = arith.constant 0 : index
    %4 = vector.load %arg5[%c0_4, %c0_5] : memref<1x128xf32, #tpu.memory_space<vmem>>, vector<1x128xf32>
    %5 = vector.broadcast %4 : vector<1x128xf32> to vector<128x128xf32>
    %6 = arith.addf %3, %5 : vector<128x128xf32>
    %7 = vector.shape_cast %6 : vector<128x128xf32> to vector<8x16x128xf32>
    %c0_6 = arith.constant 0 : index
    %c0_7 = arith.constant 0 : index
    %c0_8 = arith.constant 0 : index
    %8 = vector.load %arg15[%c0_6, %c0_7, %c0_8] : memref<8x16x128xf32, #tpu.memory_space<vmem>>, vector<8x16x128xf32>
    tpu.vector_store %arg15[%c0_6, %c0_7, %c0_8], %7 {strides = array<i32>} : memref<8x16x128xf32, #tpu.memory_space<vmem>>, vector<8x16x128xf32>,
    %c0_9 = arith.constant 0 : index
    %c0_10 = arith.constant 0 : index
    %9 = vector.load %arg4[%c0_9, %c0_10] : memref<32x128xbf16, #tpu.memory_space<vmem>>, vector<32x128xbf16>
    %cst_11 = arith.constant 0.000000e+00 : f32
    %10 = vector.broadcast %cst_11 : f32 to vector<16x32xf32>
    %c0_12 = arith.constant 0 : index
    %c0_13 = arith.constant 0 : index
    %c0_14 = arith.constant 0 : index
    %11 = vector.load %arg15[%c0_12, %c0_13, %c0_14] : memref<8x16x128xf32, #tpu.memory_space<vmem>>, vector<1x16x128xf32>
    %12 = vector.shape_cast %11 : vector<1x16x128xf32> to vector<16x128xf32>
    %cst_15 = arith.constant 5.000000e-01 : f32
    %13 = vector.broadcast %cst_15 : f32 to vector<16x128xf32>
    %14 = arith.mulf %13, %12 : vector<16x128xf32>
    %15 = math.tanh %14 : vector<16x128xf32>
    %cst_16 = arith.constant 1.000000e+00 : f32
    %16 = vector.broadcast %cst_16 : f32 to vector<16x128xf32>
    %17 = arith.addf %15, %16 : vector<16x128xf32>
    %cst_17 = arith.constant 5.000000e-01 : f32
    %18 = vector.broadcast %cst_17 : f32 to vector<16x128xf32>
    %19 = arith.mulf %18, %17 : vector<16x128xf32>
    %20 = math.tanh %12 : vector<16x128xf32>
    %21 = vector.extract_strided_slice %19 {offsets = [0, 0], sizes = [16, 32], strides = [1, 1]} : vector<16x128xf32> to vector<16x32xf32>
    %22 = vector.extract_strided_slice %19 {offsets = [0, 32], sizes = [16, 32], strides = [1, 1]} : vector<16x128xf32> to vector<16x32xf32>
    %23 = vector.extract_strided_slice %20 {offsets = [0, 64], sizes = [16, 32], strides = [1, 1]} : vector<16x128xf32> to vector<16x32xf32>
    %24 = vector.extract_strided_slice %19 {offsets = [0, 96], sizes = [16, 32], strides = [1, 1]} : vector<16x128xf32> to vector<16x32xf32>
    %25 = arith.mulf %22, %10 : vector<16x32xf32>
    %26 = arith.mulf %21, %23 : vector<16x32xf32>
    %27 = arith.addf %25, %26 : vector<16x32xf32>
    %28 = math.tanh %27 : vector<16x32xf32>
    %29 = arith.mulf %24, %28 : vector<16x32xf32>
    %c1 = arith.constant 1 : index
    %c0_18 = arith.constant 0 : index
    %c0_19 = arith.constant 0 : index
    %30 = vector.load %arg15[%c1, %c0_18, %c0_19] : memref<8x16x128xf32, #tpu.memory_space<vmem>>, vector<1x16x128xf32>
    %31 = vector.shape_cast %30 : vector<1x16x128xf32> to vector<16x128xf32>
    %32 = arith.truncf %29 : vector<16x32xf32> to vector<16x32xbf16>
    %cst_20 = arith.constant dense<0.000000e+00> : vector<16x128xf32>
    %33 = tpu.matmul %32, %9, %cst_20 {dimension_numbers = #tpu.dot_dimension_numbers<[1], [0], [0], [1], [0, 0, 1, 1], [], []>} : vector<16x32xbf16>, vector<32x128xbf16>, vector<16x128xf32> -> vector<16x128xf32>
    %34 = arith.addf %31, %33 : vector<16x128xf32>
    %cst_21 = arith.constant 5.000000e-01 : f32
    %35 = vector.broadcast %cst_21 : f32 to vector<16x128xf32>
    %36 = arith.mulf %35, %34 : vector<16x128xf32>
    %37 = math.tanh %36 : vector<16x128xf32>
    %cst_22 = arith.constant 1.000000e+00 : f32
    %38 = vector.broadcast %cst_22 : f32 to vector<16x128xf32>
    %39 = arith.addf %37, %38 : vector<16x128xf32>
    %cst_23 = arith.constant 5.000000e-01 : f32
    %40 = vector.broadcast %cst_23 : f32 to vector<16x128xf32>
    %41 = arith.mulf %40, %39 : vector<16x128xf32>
    %42 = math.tanh %34 : vector<16x128xf32>
    %43 = vector.extract_strided_slice %41 {offsets = [0, 0], sizes = [16, 32], strides = [1, 1]} : vector<16x128xf32> to vector<16x32xf32>
    %44 = vector.extract_strided_slice %41 {offsets = [0, 32], sizes = [16, 32], strides = [1, 1]} : vector<16x128xf32> to vector<16x32xf32>
    %45 = vector.extract_strided_slice %42 {offsets = [0, 64], sizes = [16, 32], strides = [1, 1]} : vector<16x128xf32> to vector<16x32xf32>
    %46 = vector.extract_strided_slice %41 {offsets = [0, 96], sizes = [16, 32], strides = [1, 1]} : vector<16x128xf32> to vector<16x32xf32>
    %47 = arith.mulf %44, %27 : vector<16x32xf32>
    %48 = arith.mulf %43, %45 : vector<16x32xf32>
    %49 = arith.addf %47, %48 : vector<16x32xf32>
    %50 = math.tanh %49 : vector<16x32xf32>
    %51 = arith.mulf %46, %50 : vector<16x32xf32>
    %c2 = arith.constant 2 : index
    %c0_24 = arith.constant 0 : index
    %c0_25 = arith.constant 0 : index
    %52 = vector.load %arg15[%c2, %c0_24, %c0_25] : memref<8x16x128xf32, #tpu.memory_space<vmem>>, vector<1x16x128xf32>
    %53 = vector.shape_cast %52 : vector<1x16x128xf32> to vector<16x128xf32>
    %54 = arith.truncf %51 : vector<16x32xf32> to vector<16x32xbf16>
    %cst_26 = arith.constant dense<0.000000e+00> : vector<16x128xf32>
    %55 = tpu.matmul %54, %9, %cst_26 {dimension_numbers = #tpu.dot_dimension_numbers<[1], [0], [0], [1], [0, 0, 1, 1], [], []>} : vector<16x32xbf16>, vector<32x128xbf16>, vector<16x128xf32> -> vector<16x128xf32>
    %56 = arith.addf %53, %55 : vector<16x128xf32>
    %cst_27 = arith.constant 5.000000e-01 : f32
    %57 = vector.broadcast %cst_27 : f32 to vector<16x128xf32>
    %58 = arith.mulf %57, %56 : vector<16x128xf32>
    %59 = math.tanh %58 : vector<16x128xf32>
    %cst_28 = arith.constant 1.000000e+00 : f32
    %60 = vector.broadcast %cst_28 : f32 to vector<16x128xf32>
    %61 = arith.addf %59, %60 : vector<16x128xf32>
    %cst_29 = arith.constant 5.000000e-01 : f32
    %62 = vector.broadcast %cst_29 : f32 to vector<16x128xf32>
    %63 = arith.mulf %62, %61 : vector<16x128xf32>
    %64 = math.tanh %56 : vector<16x128xf32>
    %65 = vector.extract_strided_slice %63 {offsets = [0, 0], sizes = [16, 32], strides = [1, 1]} : vector<16x128xf32> to vector<16x32xf32>
    %66 = vector.extract_strided_slice %63 {offsets = [0, 32], sizes = [16, 32], strides = [1, 1]} : vector<16x128xf32> to vector<16x32xf32>
    %67 = vector.extract_strided_slice %64 {offsets = [0, 64], sizes = [16, 32], strides = [1, 1]} : vector<16x128xf32> to vector<16x32xf32>
    %68 = vector.extract_strided_slice %63 {offsets = [0, 96], sizes = [16, 32], strides = [1, 1]} : vector<16x128xf32> to vector<16x32xf32>
    %69 = arith.mulf %66, %49 : vector<16x32xf32>
    %70 = arith.mulf %65, %67 : vector<16x32xf32>
    %71 = arith.addf %69, %70 : vector<16x32xf32>
    %72 = math.tanh %71 : vector<16x32xf32>
    %73 = arith.mulf %68, %72 : vector<16x32xf32>
    %c3 = arith.constant 3 : index
    %c0_30 = arith.constant 0 : index
    %c0_31 = arith.constant 0 : index
    %74 = vector.load %arg15[%c3, %c0_30, %c0_31] : memref<8x16x128xf32, #tpu.memory_space<vmem>>, vector<1x16x128xf32>
    %75 = vector.shape_cast %74 : vector<1x16x128xf32> to vector<16x128xf32>
    %76 = arith.truncf %73 : vector<16x32xf32> to vector<16x32xbf16>
    %cst_32 = arith.constant dense<0.000000e+00> : vector<16x128xf32>
    %77 = tpu.matmul %76, %9, %cst_32 {dimension_numbers = #tpu.dot_dimension_numbers<[1], [0], [0], [1], [0, 0, 1, 1], [], []>} : vector<16x32xbf16>, vector<32x128xbf16>, vector<16x128xf32> -> vector<16x128xf32>
    %78 = arith.addf %75, %77 : vector<16x128xf32>
    %cst_33 = arith.constant 5.000000e-01 : f32
    %79 = vector.broadcast %cst_33 : f32 to vector<16x128xf32>
    %80 = arith.mulf %79, %78 : vector<16x128xf32>
    %81 = math.tanh %80 : vector<16x128xf32>
    %cst_34 = arith.constant 1.000000e+00 : f32
    %82 = vector.broadcast %cst_34 : f32 to vector<16x128xf32>
    %83 = arith.addf %81, %82 : vector<16x128xf32>
    %cst_35 = arith.constant 5.000000e-01 : f32
    %84 = vector.broadcast %cst_35 : f32 to vector<16x128xf32>
    %85 = arith.mulf %84, %83 : vector<16x128xf32>
    %86 = math.tanh %78 : vector<16x128xf32>
    %87 = vector.extract_strided_slice %85 {offsets = [0, 0], sizes = [16, 32], strides = [1, 1]} : vector<16x128xf32> to vector<16x32xf32>
    %88 = vector.extract_strided_slice %85 {offsets = [0, 32], sizes = [16, 32], strides = [1, 1]} : vector<16x128xf32> to vector<16x32xf32>
    %89 = vector.extract_strided_slice %86 {offsets = [0, 64], sizes = [16, 32], strides = [1, 1]} : vector<16x128xf32> to vector<16x32xf32>
    %90 = vector.extract_strided_slice %85 {offsets = [0, 96], sizes = [16, 32], strides = [1, 1]} : vector<16x128xf32> to vector<16x32xf32>
    %91 = arith.mulf %88, %71 : vector<16x32xf32>
    %92 = arith.mulf %87, %89 : vector<16x32xf32>
    %93 = arith.addf %91, %92 : vector<16x32xf32>
    %94 = math.tanh %93 : vector<16x32xf32>
    %95 = arith.mulf %90, %94 : vector<16x32xf32>
    %c4 = arith.constant 4 : index
    %c0_36 = arith.constant 0 : index
    %c0_37 = arith.constant 0 : index
    %96 = vector.load %arg15[%c4, %c0_36, %c0_37] : memref<8x16x128xf32, #tpu.memory_space<vmem>>, vector<1x16x128xf32>
    %97 = vector.shape_cast %96 : vector<1x16x128xf32> to vector<16x128xf32>
    %98 = arith.truncf %95 : vector<16x32xf32> to vector<16x32xbf16>
    %cst_38 = arith.constant dense<0.000000e+00> : vector<16x128xf32>
    %99 = tpu.matmul %98, %9, %cst_38 {dimension_numbers = #tpu.dot_dimension_numbers<[1], [0], [0], [1], [0, 0, 1, 1], [], []>} : vector<16x32xbf16>, vector<32x128xbf16>, vector<16x128xf32> -> vector<16x128xf32>
    %100 = arith.addf %97, %99 : vector<16x128xf32>
    %cst_39 = arith.constant 5.000000e-01 : f32
    %101 = vector.broadcast %cst_39 : f32 to vector<16x128xf32>
    %102 = arith.mulf %101, %100 : vector<16x128xf32>
    %103 = math.tanh %102 : vector<16x128xf32>
    %cst_40 = arith.constant 1.000000e+00 : f32
    %104 = vector.broadcast %cst_40 : f32 to vector<16x128xf32>
    %105 = arith.addf %103, %104 : vector<16x128xf32>
    %cst_41 = arith.constant 5.000000e-01 : f32
    %106 = vector.broadcast %cst_41 : f32 to vector<16x128xf32>
    %107 = arith.mulf %106, %105 : vector<16x128xf32>
    %108 = math.tanh %100 : vector<16x128xf32>
    %109 = vector.extract_strided_slice %107 {offsets = [0, 0], sizes = [16, 32], strides = [1, 1]} : vector<16x128xf32> to vector<16x32xf32>
    %110 = vector.extract_strided_slice %107 {offsets = [0, 32], sizes = [16, 32], strides = [1, 1]} : vector<16x128xf32> to vector<16x32xf32>
    %111 = vector.extract_strided_slice %108 {offsets = [0, 64], sizes = [16, 32], strides = [1, 1]} : vector<16x128xf32> to vector<16x32xf32>
    %112 = vector.extract_strided_slice %107 {offsets = [0, 96], sizes = [16, 32], strides = [1, 1]} : vector<16x128xf32> to vector<16x32xf32>
    %113 = arith.mulf %110, %93 : vector<16x32xf32>
    %114 = arith.mulf %109, %111 : vector<16x32xf32>
    %115 = arith.addf %113, %114 : vector<16x32xf32>
    %116 = math.tanh %115 : vector<16x32xf32>
    %117 = arith.mulf %112, %116 : vector<16x32xf32>
    %c5 = arith.constant 5 : index
    %c0_42 = arith.constant 0 : index
    %c0_43 = arith.constant 0 : index
    %118 = vector.load %arg15[%c5, %c0_42, %c0_43] : memref<8x16x128xf32, #tpu.memory_space<vmem>>, vector<1x16x128xf32>
    %119 = vector.shape_cast %118 : vector<1x16x128xf32> to vector<16x128xf32>
    %120 = arith.truncf %117 : vector<16x32xf32> to vector<16x32xbf16>
    %cst_44 = arith.constant dense<0.000000e+00> : vector<16x128xf32>
    %121 = tpu.matmul %120, %9, %cst_44 {dimension_numbers = #tpu.dot_dimension_numbers<[1], [0], [0], [1], [0, 0, 1, 1], [], []>} : vector<16x32xbf16>, vector<32x128xbf16>, vector<16x128xf32> -> vector<16x128xf32>
    %122 = arith.addf %119, %121 : vector<16x128xf32>
    %cst_45 = arith.constant 5.000000e-01 : f32
    %123 = vector.broadcast %cst_45 : f32 to vector<16x128xf32>
    %124 = arith.mulf %123, %122 : vector<16x128xf32>
    %125 = math.tanh %124 : vector<16x128xf32>
    %cst_46 = arith.constant 1.000000e+00 : f32
    %126 = vector.broadcast %cst_46 : f32 to vector<16x128xf32>
    %127 = arith.addf %125, %126 : vector<16x128xf32>
    %cst_47 = arith.constant 5.000000e-01 : f32
    %128 = vector.broadcast %cst_47 : f32 to vector<16x128xf32>
    %129 = arith.mulf %128, %127 : vector<16x128xf32>
    %130 = math.tanh %122 : vector<16x128xf32>
    %131 = vector.extract_strided_slice %129 {offsets = [0, 0], sizes = [16, 32], strides = [1, 1]} : vector<16x128xf32> to vector<16x32xf32>
    %132 = vector.extract_strided_slice %129 {offsets = [0, 32], sizes = [16, 32], strides = [1, 1]} : vector<16x128xf32> to vector<16x32xf32>
    %133 = vector.extract_strided_slice %130 {offsets = [0, 64], sizes = [16, 32], strides = [1, 1]} : vector<16x128xf32> to vector<16x32xf32>
    %134 = vector.extract_strided_slice %129 {offsets = [0, 96], sizes = [16, 32], strides = [1, 1]} : vector<16x128xf32> to vector<16x32xf32>
    %135 = arith.mulf %132, %115 : vector<16x32xf32>
    %136 = arith.mulf %131, %133 : vector<16x32xf32>
    %137 = arith.addf %135, %136 : vector<16x32xf32>
    %138 = math.tanh %137 : vector<16x32xf32>
    %139 = arith.mulf %134, %138 : vector<16x32xf32>
    %c6 = arith.constant 6 : index
    %c0_48 = arith.constant 0 : index
    %c0_49 = arith.constant 0 : index
    %140 = vector.load %arg15[%c6, %c0_48, %c0_49] : memref<8x16x128xf32, #tpu.memory_space<vmem>>, vector<1x16x128xf32>
    %141 = vector.shape_cast %140 : vector<1x16x128xf32> to vector<16x128xf32>
    %142 = arith.truncf %139 : vector<16x32xf32> to vector<16x32xbf16>
    %cst_50 = arith.constant dense<0.000000e+00> : vector<16x128xf32>
    %143 = tpu.matmul %142, %9, %cst_50 {dimension_numbers = #tpu.dot_dimension_numbers<[1], [0], [0], [1], [0, 0, 1, 1], [], []>} : vector<16x32xbf16>, vector<32x128xbf16>, vector<16x128xf32> -> vector<16x128xf32>
    %144 = arith.addf %141, %143 : vector<16x128xf32>
    %cst_51 = arith.constant 5.000000e-01 : f32
    %145 = vector.broadcast %cst_51 : f32 to vector<16x128xf32>
    %146 = arith.mulf %145, %144 : vector<16x128xf32>
    %147 = math.tanh %146 : vector<16x128xf32>
    %cst_52 = arith.constant 1.000000e+00 : f32
    %148 = vector.broadcast %cst_52 : f32 to vector<16x128xf32>
    %149 = arith.addf %147, %148 : vector<16x128xf32>
    %cst_53 = arith.constant 5.000000e-01 : f32
    %150 = vector.broadcast %cst_53 : f32 to vector<16x128xf32>
    %151 = arith.mulf %150, %149 : vector<16x128xf32>
    %152 = math.tanh %144 : vector<16x128xf32>
    %153 = vector.extract_strided_slice %151 {offsets = [0, 0], sizes = [16, 32], strides = [1, 1]} : vector<16x128xf32> to vector<16x32xf32>
    %154 = vector.extract_strided_slice %151 {offsets = [0, 32], sizes = [16, 32], strides = [1, 1]} : vector<16x128xf32> to vector<16x32xf32>
    %155 = vector.extract_strided_slice %152 {offsets = [0, 64], sizes = [16, 32], strides = [1, 1]} : vector<16x128xf32> to vector<16x32xf32>
    %156 = vector.extract_strided_slice %151 {offsets = [0, 96], sizes = [16, 32], strides = [1, 1]} : vector<16x128xf32> to vector<16x32xf32>
    %157 = arith.mulf %154, %137 : vector<16x32xf32>
    %158 = arith.mulf %153, %155 : vector<16x32xf32>
    %159 = arith.addf %157, %158 : vector<16x32xf32>
    %160 = math.tanh %159 : vector<16x32xf32>
    %161 = arith.mulf %156, %160 : vector<16x32xf32>
    %c7 = arith.constant 7 : index
    %c0_54 = arith.constant 0 : index
    %c0_55 = arith.constant 0 : index
    %162 = vector.load %arg15[%c7, %c0_54, %c0_55] : memref<8x16x128xf32, #tpu.memory_space<vmem>>, vector<1x16x128xf32>
    %163 = vector.shape_cast %162 : vector<1x16x128xf32> to vector<16x128xf32>
    %164 = arith.truncf %161 : vector<16x32xf32> to vector<16x32xbf16>
    %cst_56 = arith.constant dense<0.000000e+00> : vector<16x128xf32>
    %165 = tpu.matmul %164, %9, %cst_56 {dimension_numbers = #tpu.dot_dimension_numbers<[1], [0], [0], [1], [0, 0, 1, 1], [], []>} : vector<16x32xbf16>, vector<32x128xbf16>, vector<16x128xf32> -> vector<16x128xf32>
    %166 = arith.addf %163, %165 : vector<16x128xf32>
    %cst_57 = arith.constant 5.000000e-01 : f32
    %167 = vector.broadcast %cst_57 : f32 to vector<16x128xf32>
    %168 = arith.mulf %167, %166 : vector<16x128xf32>
    %169 = math.tanh %168 : vector<16x128xf32>
    %cst_58 = arith.constant 1.000000e+00 : f32
    %170 = vector.broadcast %cst_58 : f32 to vector<16x128xf32>
    %171 = arith.addf %169, %170 : vector<16x128xf32>
    %cst_59 = arith.constant 5.000000e-01 : f32
    %172 = vector.broadcast %cst_59 : f32 to vector<16x128xf32>
    %173 = arith.mulf %172, %171 : vector<16x128xf32>
    %174 = math.tanh %166 : vector<16x128xf32>
    %175 = vector.extract_strided_slice %173 {offsets = [0, 0], sizes = [16, 32], strides = [1, 1]} : vector<16x128xf32> to vector<16x32xf32>
    %176 = vector.extract_strided_slice %173 {offsets = [0, 32], sizes = [16, 32], strides = [1, 1]} : vector<16x128xf32> to vector<16x32xf32>
    %177 = vector.extract_strided_slice %174 {offsets = [0, 64], sizes = [16, 32], strides = [1, 1]} : vector<16x128xf32> to vector<16x32xf32>
    %178 = vector.extract_strided_slice %173 {offsets = [0, 96], sizes = [16, 32], strides = [1, 1]} : vector<16x128xf32> to vector<16x32xf32>
    %179 = arith.mulf %176, %159 : vector<16x32xf32>
    %180 = arith.mulf %175, %177 : vector<16x32xf32>
    %181 = arith.addf %179, %180 : vector<16x32xf32>
    %182 = math.tanh %181 : vector<16x32xf32>
    %183 = arith.mulf %178, %182 : vector<16x32xf32>
    %c0_60 = arith.constant 0 : index
    %c0_61 = arith.constant 0 : index
    %184 = vector.load %arg2[%c0_60, %c0_61] : memref<16x4xbf16, #tpu.memory_space<vmem>>, vector<16x4xbf16>
    %c0_62 = arith.constant 0 : index
    %c0_63 = arith.constant 0 : index
    %185 = vector.load %arg6[%c0_62, %c0_63] : memref<4x16xbf16, #tpu.memory_space<vmem>>, vector<4x16xbf16>
    %cst_64 = arith.constant dense<0.000000e+00> : vector<16x16xf32>
    %186 = tpu.matmul %184, %185, %cst_64 {dimension_numbers = #tpu.dot_dimension_numbers<[1], [0], [0], [1], [0, 0, 1, 1], [], []>} : vector<16x4xbf16>, vector<4x16xbf16>, vector<16x16xf32> -> vector<16x16xf32>
    %c0_65 = arith.constant 0 : index
    %c0_66 = arith.constant 0 : index
    %187 = vector.load %arg7[%c0_65, %c0_66] : memref<1x16xf32, #tpu.memory_space<vmem>>, vector<1x16xf32>
    %188 = vector.broadcast %187 : vector<1x16xf32> to vector<16x16xf32>
    %189 = arith.addf %186, %188 : vector<16x16xf32>
    %c0_67 = arith.constant 0 : index
    %c0_68 = arith.constant 0 : index
    %190 = memref.load %arg13[%c0_67, %c0_68] : memref<1x1xf32, #tpu.memory_space<smem>>
    %cst_69 = arith.constant 0.000000e+00 : f32
    %191 = vector.broadcast %cst_69 : f32 to vector<16x16xf32>
    %192 = arith.cmpf oge, %189, %191 : vector<16x16xf32>
    %193 = vector.broadcast %190 : f32 to vector<16x16xf32>
    %194 = arith.mulf %193, %189 : vector<16x16xf32>
    %195 = arith.select %192, %189, %194 : vector<16x16xi1>, vector<16x16xf32>
    %196 = arith.truncf %183 : vector<16x32xf32> to vector<16x32xbf16>
    %c0_70 = arith.constant 0 : index
    %c0_71 = arith.constant 0 : index
    %197 = vector.load %arg8[%c0_70, %c0_71] : memref<32x16xbf16, #tpu.memory_space<vmem>>, vector<32x16xbf16>
    %cst_72 = arith.constant dense<0.000000e+00> : vector<16x16xf32>
    %198 = tpu.matmul %196, %197, %cst_72 {dimension_numbers = #tpu.dot_dimension_numbers<[1], [0], [0], [1], [0, 0, 1, 1], [], []>} : vector<16x32xbf16>, vector<32x16xbf16>, vector<16x16xf32> -> vector<16x16xf32>
    %199 = arith.truncf %195 : vector<16x16xf32> to vector<16x16xbf16>
    %c0_73 = arith.constant 0 : index
    %c0_74 = arith.constant 0 : index
    %200 = vector.load %arg9[%c0_73, %c0_74] : memref<16x16xbf16, #tpu.memory_space<vmem>>, vector<16x16xbf16>
    %cst_75 = arith.constant dense<0.000000e+00> : vector<16x16xf32>
    %201 = tpu.matmul %199, %200, %cst_75 {dimension_numbers = #tpu.dot_dimension_numbers<[1], [0], [0], [1], [0, 0, 1, 1], [], []>} : vector<16x16xbf16>, vector<16x16xbf16>, vector<16x16xf32> -> vector<16x16xf32>
    %202 = arith.addf %198, %201 : vector<16x16xf32>
    %c0_76 = arith.constant 0 : index
    %c0_77 = arith.constant 0 : index
    %203 = vector.load %arg10[%c0_76, %c0_77] : memref<1x16xf32, #tpu.memory_space<vmem>>, vector<1x16xf32>
    %204 = vector.broadcast %203 : vector<1x16xf32> to vector<16x16xf32>
    %205 = arith.addf %202, %204 : vector<16x16xf32>
    %206 = arith.truncf %205 : vector<16x16xf32> to vector<16x16xbf16>
    %c0_78 = arith.constant 0 : index
    %c0_79 = arith.constant 0 : index
    %207 = vector.load %arg11[%c0_78, %c0_79] : memref<16x128xbf16, #tpu.memory_space<vmem>>, vector<16x128xbf16>
    %cst_80 = arith.constant dense<0.000000e+00> : vector<16x128xf32>
    %208 = tpu.matmul %206, %207, %cst_80 {dimension_numbers = #tpu.dot_dimension_numbers<[1], [0], [0], [1], [0, 0, 1, 1], [], []>} : vector<16x16xbf16>, vector<16x128xbf16>, vector<16x128xf32> -> vector<16x128xf32>
    %c0_81 = arith.constant 0 : index
    %c0_82 = arith.constant 0 : index
    %209 = vector.load %arg12[%c0_81, %c0_82] : memref<1x128xf32, #tpu.memory_space<vmem>>, vector<1x128xf32>
    %210 = vector.broadcast %209 : vector<1x128xf32> to vector<16x128xf32>
    %211 = arith.addf %208, %210 : vector<16x128xf32>
    %cst_83 = arith.constant 0.000000e+00 : f32
    %212 = vector.broadcast %cst_83 : f32 to vector<16x128xf32>
    %213 = arith.cmpf oge, %211, %212 : vector<16x128xf32>
    %cst_84 = arith.constant 0.00999999977 : f32
    %214 = vector.broadcast %cst_84 : f32 to vector<16x128xf32>
    %215 = arith.mulf %214, %211 : vector<16x128xf32>
    %216 = arith.select %213, %211, %215 : vector<16x128xi1>, vector<16x128xf32>
    %c0_85 = arith.constant 0 : index
    %c0_86 = arith.constant 0 : index
    %217 = vector.load %arg14[%c0_85, %c0_86] : memref<16x128xf32, #tpu.memory_space<vmem>>, vector<16x128xf32>
    tpu.vector_store %arg14[%c0_85, %c0_86], %216 {strides = array<i32>} : memref<16x128xf32, #tpu.memory_space<vmem>>, vector<16x128xf32>,
    return
  }
  func.func @transform_0(%arg0: i32) -> (i32, i32, i32) {
    %c0_i32 = arith.constant 0 : i32
    %c0_i32_0 = arith.constant 0 : i32
    %c0_i32_1 = arith.constant 0 : i32
    return %c0_i32, %arg0, %c0_i32_0 : i32, i32, i32
  }
  func.func @transform_1(%arg0: i32) -> (i32, i32) {
    %c0_i32 = arith.constant 0 : i32
    %c0_i32_0 = arith.constant 0 : i32
    return %arg0, %c0_i32 : i32, i32
  }
  func.func @transform_2(%arg0: i32) -> (i32, i32) {
    %c0_i32 = arith.constant 0 : i32
    %c0_i32_0 = arith.constant 0 : i32
    %c0_i32_1 = arith.constant 0 : i32
    return %c0_i32, %c0_i32_0 : i32, i32
  }
  func.func @transform_3(%arg0: i32) -> (i32, i32) {
    %c0_i32 = arith.constant 0 : i32
    %c0_i32_0 = arith.constant 0 : i32
    %c0_i32_1 = arith.constant 0 : i32
    return %c0_i32, %c0_i32_0 : i32, i32
  }
  func.func @transform_4(%arg0: i32) -> (i32, i32) {
    %c0_i32 = arith.constant 0 : i32
    %c0_i32_0 = arith.constant 0 : i32
    %c0_i32_1 = arith.constant 0 : i32
    return %c0_i32, %c0_i32_0 : i32, i32
  }
  func.func @transform_5(%arg0: i32) -> (i32, i32) {
    %c0_i32 = arith.constant 0 : i32
    %c0_i32_0 = arith.constant 0 : i32
    %c0_i32_1 = arith.constant 0 : i32
    return %c0_i32, %c0_i32_0 : i32, i32
  }
  func.func @transform_6(%arg0: i32) -> (i32, i32) {
    %c0_i32 = arith.constant 0 : i32
    %c0_i32_0 = arith.constant 0 : i32
    %c0_i32_1 = arith.constant 0 : i32
    return %c0_i32, %c0_i32_0 : i32, i32
  }
  func.func @transform_7(%arg0: i32) -> (i32, i32) {
    %c0_i32 = arith.constant 0 : i32
    %c0_i32_0 = arith.constant 0 : i32
    %c0_i32_1 = arith.constant 0 : i32
    return %c0_i32, %c0_i32_0 : i32, i32
  }
  func.func @transform_8(%arg0: i32) -> (i32, i32) {
    %c0_i32 = arith.constant 0 : i32
    %c0_i32_0 = arith.constant 0 : i32
    %c0_i32_1 = arith.constant 0 : i32
    return %c0_i32, %c0_i32_0 : i32, i32
  }
  func.func @transform_9(%arg0: i32) -> (i32, i32) {
    %c0_i32 = arith.constant 0 : i32
    %c0_i32_0 = arith.constant 0 : i32
    %c0_i32_1 = arith.constant 0 : i32
    return %c0_i32, %c0_i32_0 : i32, i32
  }
  func.func @transform_10(%arg0: i32) -> (i32, i32) {
    %c0_i32 = arith.constant 0 : i32
    %c0_i32_0 = arith.constant 0 : i32
    %c0_i32_1 = arith.constant 0 : i32
    return %c0_i32, %c0_i32_0 : i32, i32
  }
  func.func @transform_11(%arg0: i32) -> (i32, i32) {
    %c0_i32 = arith.constant 0 : i32
    %c0_i32_0 = arith.constant 0 : i32
    %c0_i32_1 = arith.constant 0 : i32
    return %c0_i32, %c0_i32_0 : i32, i32
  }
  func.func @transform_12(%arg0: i32) -> (i32, i32) {
    %c0_i32 = arith.constant 0 : i32
    %c0_i32_0 = arith.constant 0 : i32
    %c0_i32_1 = arith.constant 0 : i32
    return %c0_i32, %c0_i32_0 : i32, i32
  }
  func.func @transform_13(%arg0: i32) -> (i32, i32) {
    %c0_i32 = arith.constant 0 : i32
    %c0_i32_0 = arith.constant 0 : i32
    return %arg0, %c0_i32 : i32, i32
  }
}

</mosaic_0001>

<llo_original>
// kernel: tpu_custom_call.1
$region0: #{tpu_custom_call.1}
  #allocation0 [shape = 'u32[]', space=smem, size = 0x4, offset = 0x4, fixed_abs, tag = 'smem constant byte address 0x4 - core index']
  #allocation1 [shape = 'u32[72,128]{1,0:T(1,128)}', space=vmem, size = 0x9000, scoped, tag = 'internal scratch']
  #allocation2 [shape = 'f32[8,16,128]{2,1,0:T(8,128)}', space=vmem, size = 0x10000, scoped, tag = 'scratch operand']
  #allocation3 [shape = 'f32[1,1]{1,0:T(1,128)S(6)}', space=smem, size = 0x200, scoped, tag = 'scoped memory for tpu_custom_call.1']
  %s0 = inlined_call_operand.vmem [shape: bf16[8,16,4], index: 0, kind: input, shape index: {}]
  %s1 = inlined_call_operand.vmem [shape: bf16[16,4], index: 1, kind: input, shape index: {}]
  %s2 = inlined_call_operand.vmem [shape: bf16[4,128], index: 2, kind: input, shape index: {}]
  %s3 = inlined_call_operand.vmem [shape: bf16[32,128], index: 3, kind: input, shape index: {}]
  %s4 = inlined_call_operand.vmem [shape: f32[1,128], index: 4, kind: input, shape index: {}]
  %s5 = inlined_call_operand.vmem [shape: bf16[4,16], index: 5, kind: input, shape index: {}]
  %s6 = inlined_call_operand.vmem [shape: f32[1,16], index: 6, kind: input, shape index: {}]
  %s7 = inlined_call_operand.vmem [shape: bf16[32,16], index: 7, kind: input, shape index: {}]
  %s8 = inlined_call_operand.vmem [shape: bf16[16,16], index: 8, kind: input, shape index: {}]
  %s9 = inlined_call_operand.vmem [shape: f32[1,16], index: 9, kind: input, shape index: {}]
  %s10 = inlined_call_operand.vmem [shape: bf16[16,128], index: 10, kind: input, shape index: {}]
  %s11 = inlined_call_operand.vmem [shape: f32[1,128], index: 11, kind: input, shape index: {}]
  %s12 = inlined_call_operand.<no memory space> [shape: f32[1,1], index: 12, kind: input, shape index: {}]
  %s13 = inlined_call_operand.hbm [shape: f32[16,128], index: 13, kind: output, shape index: {}]
  %s14 = sld [smem:[#allocation0]]
  $region62: #{tpu_custom_call.1} parent=0
    _
  %s16 = ssub.s32 1, %s14
  %s17 = scalar_select 0, %s16, %s14
  %18 = sst [smem:[#allocation3]] %s12
  $region1: #{tpu_custom_call.1} parent=0
    #allocation4 [shape = 'u8[8192]{0}', space=vmem, size = 0x2000, scoped, tag = 'output window, operand 0, single buffered']
    #allocation5 [shape = 's32[1]{0}', space=sflag, size = 0x4, scoped, tag = 'scoped memory for tpu_custom_call.1']
    %19 = vsyncpa [#allocation5], 0
    // Predicated region
    $region2: #{tpu_custom_call.1} parent=1 // pred_check
      _
    $region3: #{tpu_custom_call.1} parent=1 // pred_check_branch
      %21 = sbr.rel (0) target = $region5
    $region4: #{tpu_custom_call.1} parent=1 // pred_region
      _
    $region5: #{tpu_custom_call.1} parent=1 // pred_fallthru
      _
    // Predicated region
    $region6: #{tpu_custom_call.1} parent=1 // pred_check
      _
    $region7: #{tpu_custom_call.1} parent=1 // pred_check_branch
      %23 = sbr.rel (0) target = $region9
    $region8: #{tpu_custom_call.1} parent=1 // pred_region
      _
    $region9: #{tpu_custom_call.1} parent=1 // pred_fallthru
      _
    // Predicated region
    $region10: #{tpu_custom_call.1} parent=1 // pred_check
      _
    $region11: #{tpu_custom_call.1} parent=1 // pred_check_branch
      %25 = sbr.rel (0) target = $region13
    $region12: #{tpu_custom_call.1} parent=1 // pred_region
      _
    $region13: #{tpu_custom_call.1} parent=1 // pred_fallthru
      _
    // Predicated region
    $region14: #{tpu_custom_call.1} parent=1 // pred_check
      _
    $region15: #{tpu_custom_call.1} parent=1 // pred_check_branch
      %27 = sbr.rel (0) target = $region17
    $region16: #{tpu_custom_call.1} parent=1 // pred_region
      _
    $region17: #{tpu_custom_call.1} parent=1 // pred_fallthru
      _
    // Predicated region
    $region18: #{tpu_custom_call.1} parent=1 // pred_check
      _
    $region19: #{tpu_custom_call.1} parent=1 // pred_check_branch
      %29 = sbr.rel (0) target = $region21
    $region20: #{tpu_custom_call.1} parent=1 // pred_region
      _
    $region21: #{tpu_custom_call.1} parent=1 // pred_fallthru
      _
    // Predicated region
    $region22: #{tpu_custom_call.1} parent=1 // pred_check
      _
    $region23: #{tpu_custom_call.1} parent=1 // pred_check_branch
      %31 = sbr.rel (0) target = $region25
    $region24: #{tpu_custom_call.1} parent=1 // pred_region
      _
    $region25: #{tpu_custom_call.1} parent=1 // pred_fallthru
      _
    // Predicated region
    $region26: #{tpu_custom_call.1} parent=1 // pred_check
      _
    $region27: #{tpu_custom_call.1} parent=1 // pred_check_branch
      %33 = sbr.rel (0) target = $region29
    $region28: #{tpu_custom_call.1} parent=1 // pred_region
      _
    $region29: #{tpu_custom_call.1} parent=1 // pred_fallthru
      _
    // Predicated region
    $region30: #{tpu_custom_call.1} parent=1 // pred_check
      _
    $region31: #{tpu_custom_call.1} parent=1 // pred_check_branch
      %35 = sbr.rel (0) target = $region33
    $region32: #{tpu_custom_call.1} parent=1 // pred_region
      _
    $region33: #{tpu_custom_call.1} parent=1 // pred_fallthru
      _
    // Predicated region
    $region34: #{tpu_custom_call.1} parent=1 // pred_check
      _
    $region35: #{tpu_custom_call.1} parent=1 // pred_check_branch
      %37 = sbr.rel (0) target = $region37
    $region36: #{tpu_custom_call.1} parent=1 // pred_region
      _
    $region37: #{tpu_custom_call.1} parent=1 // pred_fallthru
      _
    // Predicated region
    $region38: #{tpu_custom_call.1} parent=1 // pred_check
      _
    $region39: #{tpu_custom_call.1} parent=1 // pred_check_branch
      %39 = sbr.rel (0) target = $region41
    $region40: #{tpu_custom_call.1} parent=1 // pred_region
      _
    $region41: #{tpu_custom_call.1} parent=1 // pred_fallthru
      _
    // Predicated region
    $region42: #{tpu_custom_call.1} parent=1 // pred_check
      _
    $region43: #{tpu_custom_call.1} parent=1 // pred_check_branch
      %41 = sbr.rel (0) target = $region45
    $region44: #{tpu_custom_call.1} parent=1 // pred_region
      _
    $region45: #{tpu_custom_call.1} parent=1 // pred_fallthru
      _
    // Predicated region
    $region46: #{tpu_custom_call.1} parent=1 // pred_check
      _
    $region47: #{tpu_custom_call.1} parent=1 // pred_check_branch
      %43 = sbr.rel (0) target = $region49
    $region48: #{tpu_custom_call.1} parent=1 // pred_region
      _
    $region49: #{tpu_custom_call.1} parent=1 // pred_fallthru
      _
    // Predicated region
    $region50: #{tpu_custom_call.1} parent=1 // pred_check
      _
    $region51: #{tpu_custom_call.1} parent=1 // pred_check_branch
      %45 = sbr.rel (0) target = $region53
    $region52: #{tpu_custom_call.1} parent=1 // pred_region
      _
    $region53: #{tpu_custom_call.1} parent=1 // pred_fallthru
      _
    %v47 = vld [vmem:[%s0] sm:$0xf]
    %v48 = vld [vmem:[%s0 + $0x4] sm:$0xf]
    %v49 = vld [vmem:[%s0 + $0x8] sm:$0xf]
    %v50 = vld [vmem:[%s0 + $0xc] sm:$0xf]
    %v51 = vld [vmem:[%s0 + $0x10] sm:$0xf]
    %v52 = vld [vmem:[%s0 + $0x14] sm:$0xf]
    %v53 = vld [vmem:[%s0 + $0x18] sm:$0xf]
    %v54 = vld [vmem:[%s0 + $0x1c] sm:$0xf]
    %v55 = vld [vmem:[%s0 + $0x20] sm:$0xf]
    %v56 = vld [vmem:[%s0 + $0x24] sm:$0xf]
    %v57 = vld [vmem:[%s0 + $0x28] sm:$0xf]
    %v58 = vld [vmem:[%s0 + $0x2c] sm:$0xf]
    %v59 = vld [vmem:[%s0 + $0x30] sm:$0xf]
    %v60 = vld [vmem:[%s0 + $0x34] sm:$0xf]
    %v61 = vld [vmem:[%s0 + $0x38] sm:$0xf]
    %v62 = vld [vmem:[%s0 + $0x3c] sm:$0xf]
    %v63 = vld [vmem:[%s2] sm:$0x3]
    %v64 = vld [vmem:[%s4] sm:$0x1]
    %v66 = vperm.slane %v64, 0
    %v84 = vunpack.c.l.b16 %v47
    %v85 = vunpack.c.l.b16 %v48
    %v86 = vunpack.c.l.b16 %v49
    %v87 = vunpack.c.l.b16 %v50
    %v88 = vunpack.c.l.b16 %v51
    %v89 = vunpack.c.l.b16 %v52
    %v90 = vunpack.c.l.b16 %v53
    %v91 = vunpack.c.l.b16 %v54
    %v92 = vunpack.c.l.b16 %v55
    %v93 = vunpack.c.l.b16 %v56
    %v94 = vunpack.c.l.b16 %v57
    %v95 = vunpack.c.l.b16 %v58
    %v96 = vunpack.c.l.b16 %v59
    %v97 = vunpack.c.l.b16 %v60
    %v98 = vunpack.c.l.b16 %v61
    %v99 = vunpack.c.l.b16 %v62
    %v100 = vpack.c.b16 %v85, %v84
    %v101 = vpack.c.b16 %v87, %v86
    %v102 = vpack.c.b16 %v89, %v88
    %v103 = vpack.c.b16 %v91, %v90
    %v104 = vpack.c.b16 %v93, %v92
    %v105 = vpack.c.b16 %v95, %v94
    %v106 = vpack.c.b16 %v97, %v96
    %v107 = vpack.c.b16 %v99, %v98
    %vm108 = vcmask 31744
    %v110 = vsel %vm108, %v100, 0
    %v113 = vsel %vm108, %v101, 0
    %v116 = vsel %vm108, %v102, 0
    %v119 = vsel %vm108, %v103, 0
    %v122 = vsel %vm108, %v104, 0
    %v125 = vsel %vm108, %v105, 0
    %v128 = vsel %vm108, %v106, 0
    %v131 = vsel %vm108, %v107, 0
    %vm133 = vcmask 1041408
    %v135 = vsel %vm133, %v63, 0
    %137 = vmatpush.bf16.msra.mxu0 0
    %138 = vmatpush.bf16.msra.mxu0 0
    %139 = vmatpush.bf16.msra.mxu0 0
    %140 = vmatpush.bf16.msra.mxu0 0
    %141 = vmatpush.bf16.msra.mxu0 0
    %142 = vmatpush.bf16.msra.mxu0 0
    %143 = vmatpush.bf16.msra.mxu0 0
    %144 = vmatpush.bf16.msra.mxu0 %v135
    %145 = vmatmul.bf16.gmra.mxu0 %v110
    %v146 = vpop.f32.mrf.mxu0
    %v147 = vadd.f32 %v66, %v146
    %v148 = vpop.f32.mrf.mxu0
    %v149 = vadd.f32 %v66, %v148
    %150 = vmatmul.bf16.gmra.mxu0 %v113
    %v151 = vpop.f32.mrf.mxu0
    %v152 = vadd.f32 %v66, %v151
    %v153 = vpop.f32.mrf.mxu0
    %v154 = vadd.f32 %v66, %v153
    %155 = vmatmul.bf16.gmra.mxu0 %v116
    %v156 = vpop.f32.mrf.mxu0
    %v157 = vadd.f32 %v66, %v156
    %v158 = vpop.f32.mrf.mxu0
    %v159 = vadd.f32 %v66, %v158
    %160 = vmatmul.bf16.gmra.mxu0 %v119
    %v161 = vpop.f32.mrf.mxu0
    %v162 = vadd.f32 %v66, %v161
    %v163 = vpop.f32.mrf.mxu0
    %v164 = vadd.f32 %v66, %v163
    %165 = vmatmul.bf16.gmra.mxu0 %v122
    %v166 = vpop.f32.mrf.mxu0
    %v167 = vadd.f32 %v66, %v166
    %v168 = vpop.f32.mrf.mxu0
    %v169 = vadd.f32 %v66, %v168
    %170 = vmatmul.bf16.gmra.mxu0 %v125
    %v171 = vpop.f32.mrf.mxu0
    %v172 = vadd.f32 %v66, %v171
    %v173 = vpop.f32.mrf.mxu0
    %v174 = vadd.f32 %v66, %v173
    %175 = vmatmul.bf16.gmra.mxu0 %v128
    %v176 = vpop.f32.mrf.mxu0
    %v177 = vadd.f32 %v66, %v176
    %v178 = vpop.f32.mrf.mxu0
    %v179 = vadd.f32 %v66, %v178
    %180 = vmatmul.bf16.gmra.mxu0 %v131
    %v181 = vpop.f32.mrf.mxu0
    %v182 = vadd.f32 %v66, %v181
    %v183 = vpop.f32.mrf.mxu0
    %v184 = vadd.f32 %v66, %v183
    %185 = vdwg.mxu0
    %186 = vst [vmem:[#allocation2] sm:$0xff] %v147
    %187 = vst [vmem:[#allocation2 + $0x8] sm:$0xff] %v149
    %188 = vst [vmem:[#allocation2 + $0x10] sm:$0xff] %v152
    %189 = vst [vmem:[#allocation2 + $0x18] sm:$0xff] %v154
    %190 = vst [vmem:[#allocation2 + $0x20] sm:$0xff] %v157
    %191 = vst [vmem:[#allocation2 + $0x28] sm:$0xff] %v159
    %192 = vst [vmem:[#allocation2 + $0x30] sm:$0xff] %v162
    %193 = vst [vmem:[#allocation2 + $0x38] sm:$0xff] %v164
    %194 = vst [vmem:[#allocation2 + $0x40] sm:$0xff] %v167
    %195 = vst [vmem:[#allocation2 + $0x48] sm:$0xff] %v169
    %196 = vst [vmem:[#allocation2 + $0x50] sm:$0xff] %v172
    %197 = vst [vmem:[#allocation2 + $0x58] sm:$0xff] %v174
    %198 = vst [vmem:[#allocation2 + $0x60] sm:$0xff] %v177
    %199 = vst [vmem:[#allocation2 + $0x68] sm:$0xff] %v179
    %200 = vst [vmem:[#allocation2 + $0x70] sm:$0xff] %v182
    %201 = vst [vmem:[#allocation2 + $0x78] sm:$0xff] %v184
    %v202 = vld [vmem:[%s3] sm:$0xf]
    %v203 = vld [vmem:[%s3 + $0x4] sm:$0xf]
    %v204 = vld [vmem:[%s3 + $0x8] sm:$0xf]
    %v205 = vld [vmem:[%s3 + $0xc] sm:$0xf]
    %v206 = vld [vmem:[#allocation2] sm:$0xff]
    %v207 = vld [vmem:[#allocation2 + $0x8] sm:$0xff]
    %v208 = vmul.f32 %v206, 0.5
    %v209 = vmul.f32 %v207, 0.5
    %v210 = vtanh.pop %v208
    %v211 = vtanh.pop %v209
    %v212 = vadd.f32 %v210, 1.0
    %v213 = vadd.f32 %v211, 1.0
    %v214 = vmul.f32 %v212, 0.5
    %v215 = vmul.f32 %v213, 0.5
    %v216 = vtanh.pop %v206
    %v217 = vtanh.pop %v207
    %v218 = vmul.f32 %v214, 0.0
    %v219 = vmul.f32 %v215, 0.0
    %222 = vrot.lane.b32.xlu0 %v216, 64
    %v223 = vpop.permute.xlu0 %222
    %224 = vrot.lane.b32.xlu0 %v217, 64
    %v225 = vpop.permute.xlu0 %224
    %v228 = vmul.f32 %v214, %v223
    %v229 = vmul.f32 %v215, %v225
    %232 = vrot.lane.b32.xlu0 %v228, 32
    %v233 = vpop.permute.xlu0 %232
    %234 = vrot.lane.b32.xlu0 %v229, 32
    %v235 = vpop.permute.xlu0 %234
    %v238 = vadd.f32 %v218, %v233
    %v239 = vadd.f32 %v219, %v235
    %v240 = vtanh.pop %v238
    %v241 = vtanh.pop %v239
    %244 = vrot.lane.b32.xlu0 %v240, 64
    %v245 = vpop.permute.xlu0 %244
    %246 = vrot.lane.b32.xlu0 %v241, 64
    %v247 = vpop.permute.xlu0 %246
    %v250 = vmul.f32 %v214, %v245
    %v251 = vmul.f32 %v215, %v247
    %s252 = scalar_lea.vmem [#allocation2], 16
    %v253 = vld [vmem:[%s252] sm:$0xff]
    %v254 = vld [vmem:[%s252 + $0x8] sm:$0xff]
    %v255 = vpack.c.bf16 %v251, %v250
    %257 = vrot.lane.b32.xlu0 %v255, 32
    %v258 = vpop.permute.xlu0 %257
    %v263 = vunpack.c.l.b16 %v202
    %v264 = vunpack.c.l.b16 %v203
    %v265 = vunpack.c.l.b16 %v204
    %v266 = vunpack.c.l.b16 %v205
    %v267 = vpack.c.b16 %v264, %v263
    %v268 = vpack.c.b16 %v266, %v265
    %vm271 = vcmask 261120
    %v273 = vsel %vm271, %v258, 0
    %275 = vmatpush.bf16.msra.mxu0 0
    %276 = vmatpush.bf16.msra.mxu0 0
    %277 = vmatpush.bf16.msra.mxu0 0
    %278 = vmatpush.bf16.msra.mxu0 0
    %279 = vmatpush.bf16.msra.mxu0 0
    %280 = vmatpush.bf16.msra.mxu0 0
    %281 = vmatpush.bf16.msra.mxu0 %v268
    %282 = vmatpush.bf16.msra.mxu0 %v267
    %283 = vmatmul.bf16.gmra.mxu0 %v273
    %v284 = vpop.f32.mrf.mxu0
    %v285 = vadd.f32 0.0, %v284
    %v286 = vpop.f32.mrf.mxu0
    %v287 = vadd.f32 0.0, %v286
    %288 = vdwg.mxu0
    %v289 = vadd.f32 %v253, %v285
    %v290 = vadd.f32 %v254, %v287
    %v291 = vmul.f32 %v289, 0.5
    %v292 = vmul.f32 %v290, 0.5
    %v293 = vtanh.pop %v291
    %v294 = vtanh.pop %v292
    %v295 = vadd.f32 %v293, 1.0
    %v296 = vadd.f32 %v294, 1.0
    %v297 = vmul.f32 %v295, 0.5
    %v298 = vmul.f32 %v296, 0.5
    %v299 = vtanh.pop %v289
    %v300 = vtanh.pop %v290
    %v301 = vmul.f32 %v297, %v238
    %v302 = vmul.f32 %v298, %v239
    %305 = vrot.lane.b32.xlu0 %v299, 64
    %v306 = vpop.permute.xlu0 %305
    %307 = vrot.lane.b32.xlu0 %v300, 64
    %v308 = vpop.permute.xlu0 %307
    %v311 = vmul.f32 %v297, %v306
    %v312 = vmul.f32 %v298, %v308
    %315 = vrot.lane.b32.xlu0 %v311, 32
    %v316 = vpop.permute.xlu0 %315
    %317 = vrot.lane.b32.xlu0 %v312, 32
    %v318 = vpop.permute.xlu0 %317
    %v321 = vadd.f32 %v301, %v316
    %v322 = vadd.f32 %v302, %v318
    %v323 = vtanh.pop %v321
    %v324 = vtanh.pop %v322
    %327 = vrot.lane.b32.xlu0 %v323, 64
    %v328 = vpop.permute.xlu0 %327
    %329 = vrot.lane.b32.xlu0 %v324, 64
    %v330 = vpop.permute.xlu0 %329
    %v333 = vmul.f32 %v297, %v328
    %v334 = vmul.f32 %v298, %v330
    %s335 = scalar_lea.vmem [#allocation2], 32
    %v336 = vld [vmem:[%s335] sm:$0xff]
    %v337 = vld [vmem:[%s335 + $0x8] sm:$0xff]
    %v338 = vpack.c.bf16 %v334, %v333
    %340 = vrot.lane.b32.xlu0 %v338, 32
    %v341 = vpop.permute.xlu0 %340
    %v343 = vsel %vm271, %v341, 0
    %345 = vmatpush.bf16.msra.mxu0 0
    %346 = vmatpush.bf16.msra.mxu0 0
    %347 = vmatpush.bf16.msra.mxu0 0
    %348 = vmatpush.bf16.msra.mxu0 0
    %349 = vmatpush.bf16.msra.mxu0 0
    %350 = vmatpush.bf16.msra.mxu0 0
    %351 = vmatpush.bf16.msra.mxu0 %v268
    %352 = vmatpush.bf16.msra.mxu0 %v267
    %353 = vmatmul.bf16.gmra.mxu0 %v343
    %v354 = vpop.f32.mrf.mxu0
    %v355 = vadd.f32 0.0, %v354
    %v356 = vpop.f32.mrf.mxu0
    %v357 = vadd.f32 0.0, %v356
    %358 = vdwg.mxu0
    %v359 = vadd.f32 %v336, %v355
    %v360 = vadd.f32 %v337, %v357
    %v361 = vmul.f32 %v359, 0.5
    %v362 = vmul.f32 %v360, 0.5
    %v363 = vtanh.pop %v361
    %v364 = vtanh.pop %v362
    %v365 = vadd.f32 %v363, 1.0
    %v366 = vadd.f32 %v364, 1.0
    %v367 = vmul.f32 %v365, 0.5
    %v368 = vmul.f32 %v366, 0.5
    %v369 = vtanh.pop %v359
    %v370 = vtanh.pop %v360
    %v371 = vmul.f32 %v367, %v321
    %v372 = vmul.f32 %v368, %v322
    %375 = vrot.lane.b32.xlu0 %v369, 64
    %v376 = vpop.permute.xlu0 %375
    %377 = vrot.lane.b32.xlu0 %v370, 64
    %v378 = vpop.permute.xlu0 %377
    %v381 = vmul.f32 %v367, %v376
    %v382 = vmul.f32 %v368, %v378
    %385 = vrot.lane.b32.xlu0 %v381, 32
    %v386 = vpop.permute.xlu0 %385
    %387 = vrot.lane.b32.xlu0 %v382, 32
    %v388 = vpop.permute.xlu0 %387
    %v391 = vadd.f32 %v371, %v386
    %v392 = vadd.f32 %v372, %v388
    %v393 = vtanh.pop %v391
    %v394 = vtanh.pop %v392
    %397 = vrot.lane.b32.xlu0 %v393, 64
    %v398 = vpop.permute.xlu0 %397
    %399 = vrot.lane.b32.xlu0 %v394, 64
    %v400 = vpop.permute.xlu0 %399
    %v403 = vmul.f32 %v367, %v398
    %v404 = vmul.f32 %v368, %v400
    %s405 = scalar_lea.vmem [#allocation2], 48
    %v406 = vld [vmem:[%s405] sm:$0xff]
    %v407 = vld [vmem:[%s405 + $0x8] sm:$0xff]
    %v408 = vpack.c.bf16 %v404, %v403
    %410 = vrot.lane.b32.xlu0 %v408, 32
    %v411 = vpop.permute.xlu0 %410
    %v413 = vsel %vm271, %v411, 0
    %415 = vmatpush.bf16.msra.mxu0 0
    %416 = vmatpush.bf16.msra.mxu0 0
    %417 = vmatpush.bf16.msra.mxu0 0
    %418 = vmatpush.bf16.msra.mxu0 0
    %419 = vmatpush.bf16.msra.mxu0 0
    %420 = vmatpush.bf16.msra.mxu0 0
    %421 = vmatpush.bf16.msra.mxu0 %v268
    %422 = vmatpush.bf16.msra.mxu0 %v267
    %423 = vmatmul.bf16.gmra.mxu0 %v413
    %v424 = vpop.f32.mrf.mxu0
    %v425 = vadd.f32 0.0, %v424
    %v426 = vpop.f32.mrf.mxu0
    %v427 = vadd.f32 0.0, %v426
    %428 = vdwg.mxu0
    %v429 = vadd.f32 %v406, %v425
    %v430 = vadd.f32 %v407, %v427
    %v431 = vmul.f32 %v429, 0.5
    %v432 = vmul.f32 %v430, 0.5
    %v433 = vtanh.pop %v431
    %v434 = vtanh.pop %v432
    %v435 = vadd.f32 %v433, 1.0
    %v436 = vadd.f32 %v434, 1.0
    %v437 = vmul.f32 %v435, 0.5
    %v438 = vmul.f32 %v436, 0.5
    %v439 = vtanh.pop %v429
    %v440 = vtanh.pop %v430
    %v441 = vmul.f32 %v437, %v391
    %v442 = vmul.f32 %v438, %v392
    %445 = vrot.lane.b32.xlu0 %v439, 64
    %v446 = vpop.permute.xlu0 %445
    %447 = vrot.lane.b32.xlu0 %v440, 64
    %v448 = vpop.permute.xlu0 %447
    %v451 = vmul.f32 %v437, %v446
    %v452 = vmul.f32 %v438, %v448
    %455 = vrot.lane.b32.xlu0 %v451, 32
    %v456 = vpop.permute.xlu0 %455
    %457 = vrot.lane.b32.xlu0 %v452, 32
    %v458 = vpop.permute.xlu0 %457
    %v461 = vadd.f32 %v441, %v456
    %v462 = vadd.f32 %v442, %v458
    %v463 = vtanh.pop %v461
    %v464 = vtanh.pop %v462
    %467 = vrot.lane.b32.xlu0 %v463, 64
    %v468 = vpop.permute.xlu0 %467
    %469 = vrot.lane.b32.xlu0 %v464, 64
    %v470 = vpop.permute.xlu0 %469
    %v473 = vmul.f32 %v437, %v468
    %v474 = vmul.f32 %v438, %v470
    %s475 = scalar_lea.vmem [#allocation2], 64
    %v476 = vld [vmem:[%s475] sm:$0xff]
    %v477 = vld [vmem:[%s475 + $0x8] sm:$0xff]
    %v478 = vpack.c.bf16 %v474, %v473
    %480 = vrot.lane.b32.xlu0 %v478, 32
    %v481 = vpop.permute.xlu0 %480
    %v483 = vsel %vm271, %v481, 0
    %485 = vmatpush.bf16.msra.mxu0 0
    %486 = vmatpush.bf16.msra.mxu0 0
    %487 = vmatpush.bf16.msra.mxu0 0
    %488 = vmatpush.bf16.msra.mxu0 0
    %489 = vmatpush.bf16.msra.mxu0 0
    %490 = vmatpush.bf16.msra.mxu0 0
    %491 = vmatpush.bf16.msra.mxu0 %v268
    %492 = vmatpush.bf16.msra.mxu0 %v267
    %493 = vmatmul.bf16.gmra.mxu0 %v483
    %v494 = vpop.f32.mrf.mxu0
    %v495 = vadd.f32 0.0, %v494
    %v496 = vpop.f32.mrf.mxu0
    %v497 = vadd.f32 0.0, %v496
    %498 = vdwg.mxu0
    %v499 = vadd.f32 %v476, %v495
    %v500 = vadd.f32 %v477, %v497
    %v501 = vmul.f32 %v499, 0.5
    %v502 = vmul.f32 %v500, 0.5
    %v503 = vtanh.pop %v501
    %v504 = vtanh.pop %v502
    %v505 = vadd.f32 %v503, 1.0
    %v506 = vadd.f32 %v504, 1.0
    %v507 = vmul.f32 %v505, 0.5
    %v508 = vmul.f32 %v506, 0.5
    %v509 = vtanh.pop %v499
    %v510 = vtanh.pop %v500
    %v511 = vmul.f32 %v507, %v461
    %v512 = vmul.f32 %v508, %v462
    %515 = vrot.lane.b32.xlu0 %v509, 64
    %v516 = vpop.permute.xlu0 %515
    %517 = vrot.lane.b32.xlu0 %v510, 64
    %v518 = vpop.permute.xlu0 %517
    %v521 = vmul.f32 %v507, %v516
    %v522 = vmul.f32 %v508, %v518
    %525 = vrot.lane.b32.xlu0 %v521, 32
    %v526 = vpop.permute.xlu0 %525
    %527 = vrot.lane.b32.xlu0 %v522, 32
    %v528 = vpop.permute.xlu0 %527
    %v531 = vadd.f32 %v511, %v526
    %v532 = vadd.f32 %v512, %v528
    %v533 = vtanh.pop %v531
    %v534 = vtanh.pop %v532
    %537 = vrot.lane.b32.xlu0 %v533, 64
    %v538 = vpop.permute.xlu0 %537
    %539 = vrot.lane.b32.xlu0 %v534, 64
    %v540 = vpop.permute.xlu0 %539
    %v543 = vmul.f32 %v507, %v538
    %v544 = vmul.f32 %v508, %v540
    %s545 = scalar_lea.vmem [#allocation2], 80
    %v546 = vld [vmem:[%s545] sm:$0xff]
    %v547 = vld [vmem:[%s545 + $0x8] sm:$0xff]
    %v548 = vpack.c.bf16 %v544, %v543
    %550 = vrot.lane.b32.xlu0 %v548, 32
    %v551 = vpop.permute.xlu0 %550
    %v553 = vsel %vm271, %v551, 0
    %555 = vmatpush.bf16.msra.mxu0 0
    %556 = vmatpush.bf16.msra.mxu0 0
    %557 = vmatpush.bf16.msra.mxu0 0
    %558 = vmatpush.bf16.msra.mxu0 0
    %559 = vmatpush.bf16.msra.mxu0 0
    %560 = vmatpush.bf16.msra.mxu0 0
    %561 = vmatpush.bf16.msra.mxu0 %v268
    %562 = vmatpush.bf16.msra.mxu0 %v267
    %563 = vmatmul.bf16.gmra.mxu0 %v553
    %v564 = vpop.f32.mrf.mxu0
    %v565 = vadd.f32 0.0, %v564
    %v566 = vpop.f32.mrf.mxu0
    %v567 = vadd.f32 0.0, %v566
    %568 = vdwg.mxu0
    %v569 = vadd.f32 %v546, %v565
    %v570 = vadd.f32 %v547, %v567
    %v571 = vmul.f32 %v569, 0.5
    %v572 = vmul.f32 %v570, 0.5
    %v573 = vtanh.pop %v571
    %v574 = vtanh.pop %v572
    %v575 = vadd.f32 %v573, 1.0
    %v576 = vadd.f32 %v574, 1.0
    %v577 = vmul.f32 %v575, 0.5
    %v578 = vmul.f32 %v576, 0.5
    %v579 = vtanh.pop %v569
    %v580 = vtanh.pop %v570
    %v581 = vmul.f32 %v577, %v531
    %v582 = vmul.f32 %v578, %v532
    %585 = vrot.lane.b32.xlu0 %v579, 64
    %v586 = vpop.permute.xlu0 %585
    %587 = vrot.lane.b32.xlu0 %v580, 64
    %v588 = vpop.permute.xlu0 %587
    %v591 = vmul.f32 %v577, %v586
    %v592 = vmul.f32 %v578, %v588
    %595 = vrot.lane.b32.xlu0 %v591, 32
    %v596 = vpop.permute.xlu0 %595
    %597 = vrot.lane.b32.xlu0 %v592, 32
    %v598 = vpop.permute.xlu0 %597
    %v601 = vadd.f32 %v581, %v596
    %v602 = vadd.f32 %v582, %v598
    %v603 = vtanh.pop %v601
    %v604 = vtanh.pop %v602
    %607 = vrot.lane.b32.xlu0 %v603, 64
    %v608 = vpop.permute.xlu0 %607
    %609 = vrot.lane.b32.xlu0 %v604, 64
    %v610 = vpop.permute.xlu0 %609
    %v613 = vmul.f32 %v577, %v608
    %v614 = vmul.f32 %v578, %v610
    %s615 = scalar_lea.vmem [#allocation2], 96
    %v616 = vld [vmem:[%s615] sm:$0xff]
    %v617 = vld [vmem:[%s615 + $0x8] sm:$0xff]
    %v618 = vpack.c.bf16 %v614, %v613
    %620 = vrot.lane.b32.xlu0 %v618, 32
    %v621 = vpop.permute.xlu0 %620
    %v623 = vsel %vm271, %v621, 0
    %625 = vmatpush.bf16.msra.mxu0 0
    %626 = vmatpush.bf16.msra.mxu0 0
    %627 = vmatpush.bf16.msra.mxu0 0
    %628 = vmatpush.bf16.msra.mxu0 0
    %629 = vmatpush.bf16.msra.mxu0 0
    %630 = vmatpush.bf16.msra.mxu0 0
    %631 = vmatpush.bf16.msra.mxu0 %v268
    %632 = vmatpush.bf16.msra.mxu0 %v267
    %633 = vmatmul.bf16.gmra.mxu0 %v623
    %v634 = vpop.f32.mrf.mxu0
    %v635 = vadd.f32 0.0, %v634
    %v636 = vpop.f32.mrf.mxu0
    %v637 = vadd.f32 0.0, %v636
    %638 = vdwg.mxu0
    %v639 = vadd.f32 %v616, %v635
    %v640 = vadd.f32 %v617, %v637
    %v641 = vmul.f32 %v639, 0.5
    %v642 = vmul.f32 %v640, 0.5
    %v643 = vtanh.pop %v641
    %v644 = vtanh.pop %v642
    %v645 = vadd.f32 %v643, 1.0
    %v646 = vadd.f32 %v644, 1.0
    %v647 = vmul.f32 %v645, 0.5
    %v648 = vmul.f32 %v646, 0.5
    %v649 = vtanh.pop %v639
    %v650 = vtanh.pop %v640
    %v651 = vmul.f32 %v647, %v601
    %v652 = vmul.f32 %v648, %v602
    %655 = vrot.lane.b32.xlu0 %v649, 64
    %v656 = vpop.permute.xlu0 %655
    %657 = vrot.lane.b32.xlu0 %v650, 64
    %v658 = vpop.permute.xlu0 %657
    %v661 = vmul.f32 %v647, %v656
    %v662 = vmul.f32 %v648, %v658
    %665 = vrot.lane.b32.xlu0 %v661, 32
    %v666 = vpop.permute.xlu0 %665
    %667 = vrot.lane.b32.xlu0 %v662, 32
    %v668 = vpop.permute.xlu0 %667
    %v671 = vadd.f32 %v651, %v666
    %v672 = vadd.f32 %v652, %v668
    %v673 = vtanh.pop %v671
    %v674 = vtanh.pop %v672
    %677 = vrot.lane.b32.xlu0 %v673, 64
    %v678 = vpop.permute.xlu0 %677
    %679 = vrot.lane.b32.xlu0 %v674, 64
    %v680 = vpop.permute.xlu0 %679
    %v683 = vmul.f32 %v647, %v678
    %v684 = vmul.f32 %v648, %v680
    %s685 = scalar_lea.vmem [#allocation2], 112
    %v686 = vld [vmem:[%s685] sm:$0xff]
    %v687 = vld [vmem:[%s685 + $0x8] sm:$0xff]
    %v688 = vpack.c.bf16 %v684, %v683
    %690 = vrot.lane.b32.xlu0 %v688, 32
    %v691 = vpop.permute.xlu0 %690
    %v693 = vsel %vm271, %v691, 0
    %695 = vmatpush.bf16.msra.mxu0 0
    %696 = vmatpush.bf16.msra.mxu0 0
    %697 = vmatpush.bf16.msra.mxu0 0
    %698 = vmatpush.bf16.msra.mxu0 0
    %699 = vmatpush.bf16.msra.mxu0 0
    %700 = vmatpush.bf16.msra.mxu0 0
    %701 = vmatpush.bf16.msra.mxu0 %v268
    %702 = vmatpush.bf16.msra.mxu0 %v267
    %703 = vmatmul.bf16.gmra.mxu0 %v693
    %v704 = vpop.f32.mrf.mxu0
    %v705 = vadd.f32 0.0, %v704
    %v706 = vpop.f32.mrf.mxu0
    %v707 = vadd.f32 0.0, %v706
    %708 = vdwg.mxu0
    %v709 = vadd.f32 %v686, %v705
    %v710 = vadd.f32 %v687, %v707
    %v711 = vmul.f32 %v709, 0.5
    %v712 = vmul.f32 %v710, 0.5
    %v713 = vtanh.pop %v711
    %v714 = vtanh.pop %v712
    %v715 = vadd.f32 %v713, 1.0
    %v716 = vadd.f32 %v714, 1.0
    %v717 = vmul.f32 %v715, 0.5
    %v718 = vmul.f32 %v716, 0.5
    %v719 = vtanh.pop %v709
    %v720 = vtanh.pop %v710
    %v721 = vmul.f32 %v717, %v671
    %v722 = vmul.f32 %v718, %v672
    %725 = vrot.lane.b32.xlu0 %v719, 64
    %v726 = vpop.permute.xlu0 %725
    %727 = vrot.lane.b32.xlu0 %v720, 64
    %v728 = vpop.permute.xlu0 %727
    %v731 = vmul.f32 %v717, %v726
    %v732 = vmul.f32 %v718, %v728
    %735 = vrot.lane.b32.xlu0 %v731, 32
    %v736 = vpop.permute.xlu0 %735
    %737 = vrot.lane.b32.xlu0 %v732, 32
    %v738 = vpop.permute.xlu0 %737
    %v741 = vadd.f32 %v721, %v736
    %v742 = vadd.f32 %v722, %v738
    %v743 = vtanh.pop %v741
    %v744 = vtanh.pop %v742
    %747 = vrot.lane.b32.xlu0 %v743, 64
    %v748 = vpop.permute.xlu0 %747
    %749 = vrot.lane.b32.xlu0 %v744, 64
    %v750 = vpop.permute.xlu0 %749
    %v753 = vmul.f32 %v717, %v748
    %v754 = vmul.f32 %v718, %v750
    %v755 = vld [vmem:[%s1] sm:$0xf]
    %v756 = vld [vmem:[%s1 + $0x4] sm:$0xf]
    %v757 = vld [vmem:[%s5] sm:$0x3]
    %v758 = vld [vmem:[%s6] sm:$0x1]
    %v760 = vperm.slane %v758, 0
    %v764 = vunpack.c.l.b16 %v755
    %v765 = vunpack.c.l.b16 %v756
    %v766 = vpack.c.b16 %v765, %v764
    %v768 = vsel %vm108, %v766, 0
    %v771 = vsel %vm133, %v757, 0
    %773 = vmatpush.bf16.msra.mxu0 0
    %774 = vmatpush.bf16.msra.mxu0 0
    %775 = vmatpush.bf16.msra.mxu0 0
    %776 = vmatpush.bf16.msra.mxu0 0
    %777 = vmatpush.bf16.msra.mxu0 0
    %778 = vmatpush.bf16.msra.mxu0 0
    %779 = vmatpush.bf16.msra.mxu0 0
    %780 = vmatpush.bf16.msra.mxu0 %v771
    %781 = vmatmul.bf16.gmra.mxu0 %v768
    %v782 = vpop.f32.mrf.mxu0
    %v783 = vadd.f32 %v760, %v782
    %v784 = vpop.f32.mrf.mxu0
    %v785 = vadd.f32 %v760, %v784
    %786 = vdwg.mxu0
    %s787 = sld [smem:[#allocation3]]
    %vm788 = vcmp.ge.f32.partialorder %v783, 0.0
    %vm789 = vcmp.ge.f32.partialorder %v785, 0.0
    %v790 = vstv %s787
    %v791 = vmul.f32 %v790, %v783
    %v792 = vmul.f32 %v790, %v785
    %v793 = vsel %vm788, %v783, %v791
    %v794 = vsel %vm789, %v785, %v792
    %v795 = vpack.c.bf16 %v754, %v753
    %v796 = vld [vmem:[%s7] sm:$0xf]
    %v797 = vld [vmem:[%s7 + $0x4] sm:$0xf]
    %v798 = vld [vmem:[%s7 + $0x8] sm:$0xf]
    %v799 = vld [vmem:[%s7 + $0xc] sm:$0xf]
    %v800 = vpack.c.bf16 %v794, %v793
    %v801 = vld [vmem:[%s8] sm:$0xf]
    %v802 = vld [vmem:[%s8 + $0x4] sm:$0xf]
    %v805 = vunpack.c.l.b16 %v801
    %v806 = vunpack.c.l.b16 %v802
    %v807 = vpack.c.b16 %v806, %v805
    %vm809 = vcmask 130048
    %v811 = vsel %vm809, %v800, 0
    %813 = vmatpush.bf16.msra.mxu0 0
    %814 = vmatpush.bf16.msra.mxu0 0
    %815 = vmatpush.bf16.msra.mxu0 0
    %816 = vmatpush.bf16.msra.mxu0 0
    %817 = vmatpush.bf16.msra.mxu0 0
    %818 = vmatpush.bf16.msra.mxu0 0
    %819 = vmatpush.bf16.msra.mxu0 0
    %820 = vmatpush.bf16.msra.mxu0 %v807
    %821 = vmatmul.bf16.gmra.mxu0 %v811
    %v822 = vpop.f32.mrf.mxu0
    %v823 = vadd.f32 0.0, %v822
    %v824 = vpop.f32.mrf.mxu0
    %v825 = vadd.f32 0.0, %v824
    %826 = vdwg.mxu0
    %828 = vrot.lane.b32.xlu0 %v795, 32
    %v829 = vpop.permute.xlu0 %828
    %v834 = vunpack.c.l.b16 %v796
    %v835 = vunpack.c.l.b16 %v797
    %v836 = vunpack.c.l.b16 %v798
    %v837 = vunpack.c.l.b16 %v799
    %v838 = vpack.c.b16 %v835, %v834
    %v839 = vpack.c.b16 %v837, %v836
    %v843 = vsel %vm271, %v829, 0
    %845 = vmatpush.bf16.msra.mxu0 0
    %846 = vmatpush.bf16.msra.mxu0 0
    %847 = vmatpush.bf16.msra.mxu0 0
    %848 = vmatpush.bf16.msra.mxu0 0
    %849 = vmatpush.bf16.msra.mxu0 0
    %850 = vmatpush.bf16.msra.mxu0 0
    %851 = vmatpush.bf16.msra.mxu0 %v839
    %852 = vmatpush.bf16.msra.mxu0 %v838
    %853 = vmatmul.bf16.gmra.mxu0 %v843
    %v854 = vpop.f32.mrf.mxu0
    %v855 = vadd.f32 %v823, %v854
    %v856 = vpop.f32.mrf.mxu0
    %v857 = vadd.f32 %v825, %v856
    %858 = vdwg.mxu0
    %v859 = vld [vmem:[%s9] sm:$0x1]
    %v861 = vperm.slane %v859, 0
    %v863 = vadd.f32 %v855, %v861
    %v864 = vadd.f32 %v857, %v861
    %v865 = vpack.c.bf16 %v864, %v863
    %v866 = vld [vmem:[%s10] sm:$0xf]
    %v867 = vld [vmem:[%s10 + $0x4] sm:$0xf]
    %v868 = vld [vmem:[%s11] sm:$0x1]
    %v870 = vperm.slane %v868, 0
    %v874 = vunpack.c.l.b16 %v866
    %v875 = vunpack.c.l.b16 %v867
    %v876 = vpack.c.b16 %v875, %v874
    %v879 = vsel %vm809, %v865, 0
    %881 = vmatpush.bf16.msra.mxu0 0
    %882 = vmatpush.bf16.msra.mxu0 0
    %883 = vmatpush.bf16.msra.mxu0 0
    %884 = vmatpush.bf16.msra.mxu0 0
    %885 = vmatpush.bf16.msra.mxu0 0
    %886 = vmatpush.bf16.msra.mxu0 0
    %887 = vmatpush.bf16.msra.mxu0 0
    %888 = vmatpush.bf16.msra.mxu0 %v876
    %889 = vmatmul.bf16.gmra.mxu0 %v879
    %v890 = vpop.f32.mrf.mxu0
    %v891 = vadd.f32 %v870, %v890
    %v892 = vpop.f32.mrf.mxu0
    %v893 = vadd.f32 %v870, %v892
    %894 = vdwg.mxu0
    %vm895 = vcmp.ge.f32.partialorder %v891, 0.0
    %vm896 = vcmp.ge.f32.partialorder %v893, 0.0
    %v897 = vmul.f32 %v891, 0.01
    %v898 = vmul.f32 %v893, 0.01
    %v899 = vsel %vm895, %v891, %v897
    %v900 = vsel %vm896, %v893, %v898
    %901 = vst [vmem:[#allocation4] sm:$0xff] %v899
    %902 = vst [vmem:[#allocation4 + $0x8] sm:$0xff] %v900
    // Predicated region
    $region54: #{tpu_custom_call.1} parent=1 // pred_check
      _
    $region55: #{tpu_custom_call.1} parent=1 // pred_check_branch
      %904 = sbr.rel (0) target = $region57
    $region56: #{tpu_custom_call.1} parent=1 // pred_region
      %906 = vsyncadd [#allocation5], 0
      %s907 = sshll.u32 [#allocation4], 4
      %s908 = int_to_ptr.vmem [resolvable:$true] %s907
      %s909 = sshll.u32 %s13, 4
      %s910 = int_to_ptr.hbm [resolvable:$true] %s909
      %915 = dma.vmem_to_hbm [thread:$0]  %s908, 256, %s910, [#allocation5], 128, 128, 8
    $region57: #{tpu_custom_call.1} parent=1 // pred_fallthru
      _
    // Predicated region
    $region58: #{tpu_custom_call.1} parent=1 // pred_check
      _
    $region59: #{tpu_custom_call.1} parent=1 // pred_check_branch
      %917 = sbr.rel (0) target = $region61
    $region60: #{tpu_custom_call.1} parent=1 // pred_region
      %919 = dma.done [#allocation5], 256
    $region61: #{tpu_custom_call.1} parent=1 // pred_fallthru
      _
    %920 = vsyncpa [#allocation5], 1

</llo_original>
